<compile_context>
chip_gen: v7x
topology: tpu7x:2x2x1
jax: 0.10.0
libtpu: 0.0.40
codegen_flags: <defaults>
</compile_context>

<pallas_src>
import numpy as np
import jax
import jax.numpy as jnp
from jax import lax
from jax.experimental import pallas as pl
from jax.experimental.pallas import tpu as pltpu

D_MODEL = 12
FFN_H = 4
CLS = 2            # CLS marker symbol id (prepended at position 0); data symbols {0, 1}
SHARP = 1.0e4      # C: quadratic sharpening of the mirror attention
CLS_SELF = 1.0e4   # B: CLS self-attention bonus (needs B > C * (1 - 1/S^2))
ERROR = 1e-7       # PalindromeExactTransformer(error=1e-07)
TB = 128           # words per grid step (lane dimension -> full 128-lane vregs)


# ---------------------------------------------------------------------------
# Pallas kernel: one batch tile of TB words.
# Layout: positions on sublanes, words on lanes  ->  (S, TB) tiles.
# ---------------------------------------------------------------------------
def palindrome_kernel(tok_ref, z_ref):
    tok = tok_ref[...]                                   # (S, TB) int32
    S = tok.shape[0]
    inv_s = 1.0 / S

    # ---- fused exact_word_embedding: data-symbol indicator features -----------
    a0 = (tok == 0).astype(jnp.float32)                  # (S, TB)
    a1 = (tok == 1).astype(jnp.float32)

    # ---- layer 1 attention: position i attends sharply to its mirror S - i ----
    # score(i, j) = -C (j/S)^2 + 2C ((S-i)/S)(j/S) + B [i==0][j==0]
    #            ==  -C (j/S - (S-i)/S)^2 + B [i==0][j==0]   (up to a per-row const)
    # Wq/Wk of the construction are zero on the data-symbol dims, so the score
    # matrix is word-independent: build it ONCE per tile (saves the per-word
    # Q/K/QK^T MXU passes and the .T).
    ii = lax.broadcasted_iota(jnp.int32, (S, S), 0)
    jj = lax.broadcasted_iota(jnp.int32, (S, S), 1)
    jn = jj.astype(jnp.float32) * inv_s                  # j / S
    tgt = (S - ii).astype(jnp.float32) * inv_s           # (S - i) / S  (mirror coord)
    cls_qk = ((ii == 0) & (jj == 0)).astype(jnp.float32)
    s = (2.0 * SHARP) * tgt * jn - SHARP * (jn * jn) + CLS_SELF * cls_qk
    s = s - jnp.max(s, axis=-1, keepdims=True)
    p = jnp.exp(s)
    # Exact division on purpose (NOT pl.reciprocal(approx=True)): the module accepts
    # iff |z| <= 1e-7, so matched positions must stay *exactly* 0.  Off-peak scores
    # sit >= C/S^2 (~123 for S=9) below the peak, exp() underflows to 0, and the
    # divide by the (exactly 1.0) row sum keeps each row an exact one-hot.
    p = p / jnp.sum(p, axis=-1, keepdims=True)           # (S, S)

    # value path (Wv copies the two data indicators): symbol at the mirror position
    m0 = jnp.dot(p, a0, preferred_element_type=jnp.float32)   # (S, TB)
    m1 = jnp.dot(p, a1, preferred_element_type=jnp.float32)

    # ---- layer-1 FFN (4 ReLU units, residual into scratch dim 11) -------------
    mis = (jnp.maximum(a0 - m0, 0.0) + jnp.maximum(m0 - a0, 0.0) +
           jnp.maximum(a1 - m1, 0.0) + jnp.maximum(m1 - a1, 0.0))   # (S, TB)

    # ---- layer 2: Wq = Wk = 0  =>  exactly uniform attention == column mean ----
    # (specialised per perf feedback; layer-2 FFN of the construction is 0).
    # Wv maps dim 11 -> dim 10 and output_layer reads dim 10 at the CLS row,
    # so z = mean_i mis[i].  The output projection matmul is dropped entirely.
    z_ref[...] = jnp.sum(mis, axis=0, keepdims=True) * inv_s        # (1, TB)


# ---------------------------------------------------------------------------
# Jitted forward: tokens -> (accept, z) for a whole batch of words.
# ---------------------------------------------------------------------------
@jax.jit
def palindrome_forward(tokens):
    """tokens: (S, B) int32, CLS at row 0, one word per column (B % TB == 0).
    Returns (accept: bool (B,), z: float32 (B,)); the module's forward(w) is
    (activation(z), 0) per word, accept == activation(z)."""
    S, B = tokens.shape
    assert B % TB == 0, "demo assumes the batch is a multiple of TB"
    z2 = pl.pallas_call(
        palindrome_kernel,
        out_shape=jax.ShapeDtypeStruct((1, B), jnp.float32),
        grid=(B // TB,),
        in_specs=[pl.BlockSpec((S, TB), lambda b: (0, b))],
        out_specs=pl.BlockSpec((1, TB), lambda b: (0, b)),
        compiler_params=pltpu.CompilerParams(dimension_semantics=("parallel",)),
    )(tokens)
    z = z2[0]                                  # (B,)
    accept = jnp.abs(z) <= ERROR               # activation(): |z| <= error
    return accept, z


# ---------------------------------------------------------------------------
# Dense (unspecialised) reference of the reconstructed construction, used only
# to validate the Pallas kernel.  Documents the explicit 12-dim weights.
# dims: 0..3 word one-hot; 4 i/S; 5 (S-i)/S; 6 (i/S)^2; 7 const 1;
#       8,9 mirror symbol; 10 answer (read by output_layer); 11 mismatch scratch.
# ---------------------------------------------------------------------------
def build_dense_params():
    wq = np.zeros((2, D_MODEL, D_MODEL), np.float32)
    wk = np.zeros((2, D_MODEL, D_MODEL), np.float32)
    wv = np.zeros((2, D_MODEL, D_MODEL), np.float32)
    w1 = np.zeros((2, D_MODEL, FFN_H), np.float32)
    b1 = np.zeros((2, FFN_H), np.float32)
    w2 = np.zeros((2, FFN_H, D_MODEL), np.float32)
    b2 = np.zeros((2, D_MODEL), np.float32)

    # layer 1: sharp attention to the mirror position
    wq[0, 7, 0] = 1.0
    wq[0, 5, 1] = 1.0
    wq[0, CLS, 2] = 1.0
    wk[0, 6, 0] = -SHARP
    wk[0, 4, 1] = 2.0 * SHARP
    wk[0, CLS, 2] = CLS_SELF
    wv[0, 0, 8] = 1.0
    wv[0, 1, 9] = 1.0
    # layer-1 FFN: dim 11 <- |x0 - x8| + |x1 - x9|
    w1[0, 0, 0], w1[0, 8, 0] = 1.0, -1.0
    w1[0, 8, 1], w1[0, 0, 1] = 1.0, -1.0
    w1[0, 1, 2], w1[0, 9, 2] = 1.0, -1.0
    w1[0, 9, 3], w1[0, 1, 3] = 1.0, -1.0
    w2[0, :, 11] = 1.0
    # layer 2: uniform attention (Wq = Wk = 0), value copies dim 11 -> 10, FFN zero
    wv[1, 11, 10] = 1.0

    wout = np.zeros((D_MODEL, 1), np.float32)
    wout[10, 0] = 1.0                        # output_layer.weight = [[0,...,0,1,0]]
    bout = np.zeros((1,), np.float32)        # output_layer.bias   = [0.0]
    return tuple(jnp.asarray(a) for a in (wq, wk, wv, w1, b1, w2, b2, wout, bout))


def pos_encoding(S):
    i = jnp.arange(S, dtype=jnp.float32)
    inv_s = 1.0 / S
    p = jnp.zeros((S, D_MODEL), jnp.float32)
    p = p.at[:, 4].set(i * inv_s)
    p = p.at[:, 5].set((S - i) * inv_s)
    p = p.at[:, 6].set((i * inv_s) ** 2)
    p = p.at[:, 7].set(1.0)
    return p


def ref_forward_dense(tokens, params):
    wq, wk, wv, w1, b1, w2, b2, wout, bout = params
    S, _ = tokens.shape
    x = jnp.eye(4, D_MODEL, dtype=jnp.float32)[tokens.T] + pos_encoding(S)[None]  # (B,S,12)
    for l in range(2):
        q, k, v = x @ wq[l], x @ wk[l], x @ wv[l]
        att = jax.nn.softmax(jnp.einsum('bqd,bkd->bqk', q, k), axis=-1)
        x = x + jnp.einsum('bqk,bkd->bqd', att, v)
        h = jnp.maximum(jnp.einsum('bsd,dh->bsh', x, w1[l]) + b1[l], 0.0)
        x = x + jnp.einsum('bsh,hd->bsd', h, w2[l]) + b2[l]
    z = x[:, 0, :] @ wout + bout             # output_layer(y[0]) per word
    return z[:, 0]


if __name__ == "__main__":
    B, n = 256, 8                            # 256 words of length 8; + CLS -> S = 9
    key = jax.random.PRNGKey(0)
    k1, k2 = jax.random.split(key)
    halves = jax.random.bernoulli(k1, 0.5, (B // 2, n // 2)).astype(jnp.int32)
    pal = jnp.concatenate([halves, halves[:, ::-1]], axis=1)            # palindromes
    rnd = jax.random.bernoulli(k2, 0.5, (B // 2, n)).astype(jnp.int32)  # mostly not
    words = jnp.concatenate([pal, rnd], axis=0)                         # (B, n)
    tokens = jnp.concatenate(
        [jnp.full((B, 1), CLS, jnp.int32), words], axis=1).T            # (S, B)

    accept, z = palindrome_forward(tokens)
    jax.block_until_ready((accept, z))       # single device sync, at the very end

    # ---- validation --------------------------------------------------------
    z_ref = ref_forward_dense(tokens, build_dense_params())
    np.testing.assert_allclose(np.asarray(z), np.asarray(z_ref), rtol=1e-5, atol=1e-6)

    words_np = np.asarray(words)
    is_pal = (words_np == words_np[:, ::-1]).all(axis=1)
    accept_np = np.asarray(accept)
    assert np.array_equal(accept_np, is_pal), "palindrome decisions disagree"
    assert is_pal[: B // 2].all() and (~is_pal[B // 2:]).any()

    # module interface: forward(w) -> (activation(z), 0) per word
    _example_outputs = [(bool(a), 0) for a in accept_np[:4]]

    print("KERNEL_OK")
</pallas_src>

<mosaic_0001>
module attributes {stable_mosaic.version = 11 : i64} {
  func.func @palindrome_kernel(%arg0: i32, %arg1: memref<9x128xi32, #tpu.memory_space<vmem>>, %arg2: memref<1x128xf32, #tpu.memory_space<vmem>>) attributes {dimension_semantics = [#tpu.dimension_semantics<parallel>], iteration_bounds = array<i64: 2>, scalar_prefetch = 0 : i64, scratch_operands = 0 : i64, tpu.core_type = #tpu.core_type<tc>, window_params = [{transform_indices = @transform_0, window_bounds = array<i64: 9, 128>}, {transform_indices = @transform_1, window_bounds = array<i64: 1, 128>}]} {
    %c0 = arith.constant 0 : index
    %c0_0 = arith.constant 0 : index
    %0 = vector.load %arg1[%c0, %c0_0] : memref<9x128xi32, #tpu.memory_space<vmem>>, vector<9x128xi32>
    %c0_i32 = arith.constant 0 : i32
    %1 = vector.broadcast %c0_i32 : i32 to vector<9x128xi32>
    %2 = arith.cmpi eq, %0, %1 : vector<9x128xi32>
    %3 = arith.extui %2 : vector<9x128xi1> to vector<9x128xi32>
    %4 = arith.sitofp %3 : vector<9x128xi32> to vector<9x128xf32>
    %c1_i32 = arith.constant 1 : i32
    %5 = vector.broadcast %c1_i32 : i32 to vector<9x128xi32>
    %6 = arith.cmpi eq, %0, %5 : vector<9x128xi32>
    %7 = arith.extui %6 : vector<9x128xi1> to vector<9x128xi32>
    %8 = arith.sitofp %7 : vector<9x128xi32> to vector<9x128xf32>
    %9 = tpu.iota {dimensions = array<i32: 0>} : vector<9x9xi32>
    %10 = tpu.iota {dimensions = array<i32: 1>} : vector<9x9xi32>
    %11 = arith.sitofp %10 : vector<9x9xi32> to vector<9x9xf32>
    %cst = arith.constant 0.111111112 : f32
    %12 = vector.broadcast %cst : f32 to vector<9x9xf32>
    %13 = arith.mulf %11, %12 : vector<9x9xf32>
    %c9_i32 = arith.constant 9 : i32
    %14 = vector.broadcast %c9_i32 : i32 to vector<9x9xi32>
    %15 = arith.subi %14, %9 : vector<9x9xi32>
    %16 = arith.sitofp %15 : vector<9x9xi32> to vector<9x9xf32>
    %cst_1 = arith.constant 0.111111112 : f32
    %17 = vector.broadcast %cst_1 : f32 to vector<9x9xf32>
    %18 = arith.mulf %16, %17 : vector<9x9xf32>
    %c0_i32_2 = arith.constant 0 : i32
    %19 = vector.broadcast %c0_i32_2 : i32 to vector<9x9xi32>
    %20 = arith.cmpi eq, %9, %19 : vector<9x9xi32>
    %c0_i32_3 = arith.constant 0 : i32
    %21 = vector.broadcast %c0_i32_3 : i32 to vector<9x9xi32>
    %22 = arith.cmpi eq, %10, %21 : vector<9x9xi32>
    %23 = arith.andi %20, %22 : vector<9x9xi1>
    %24 = arith.extui %23 : vector<9x9xi1> to vector<9x9xi32>
    %25 = arith.sitofp %24 : vector<9x9xi32> to vector<9x9xf32>
    %cst_4 = arith.constant 2.000000e+04 : f32
    %26 = vector.broadcast %cst_4 : f32 to vector<9x9xf32>
    %27 = arith.mulf %26, %18 : vector<9x9xf32>
    %28 = arith.mulf %27, %13 : vector<9x9xf32>
    %29 = arith.mulf %13, %13 : vector<9x9xf32>
    %cst_5 = arith.constant 1.000000e+04 : f32
    %30 = vector.broadcast %cst_5 : f32 to vector<9x9xf32>
    %31 = arith.mulf %30, %29 : vector<9x9xf32>
    %32 = arith.subf %28, %31 : vector<9x9xf32>
    %cst_6 = arith.constant 1.000000e+04 : f32
    %33 = vector.broadcast %cst_6 : f32 to vector<9x9xf32>
    %34 = arith.mulf %33, %25 : vector<9x9xf32>
    %35 = arith.addf %32, %34 : vector<9x9xf32>
    %cst_7 = arith.constant dense<0xFF800000> : vector<9xf32>
    %36 = vector.multi_reduction <maximumf>, %35, %cst_7 [1] : vector<9x9xf32> to vector<9xf32>
    %37 = vector.shape_cast %36 : vector<9xf32> to vector<9x1xf32>
    %38 = vector.broadcast %37 : vector<9x1xf32> to vector<9x9xf32>
    %39 = arith.subf %35, %38 : vector<9x9xf32>
    %40 = math.exp %39 : vector<9x9xf32>
    %cst_8 = arith.constant dense<0.000000e+00> : vector<9xf32>
    %41 = vector.multi_reduction <add>, %40, %cst_8 [1] : vector<9x9xf32> to vector<9xf32>
    %42 = vector.shape_cast %41 : vector<9xf32> to vector<9x1xf32>
    %43 = vector.broadcast %42 : vector<9x1xf32> to vector<9x9xf32>
    %44 = arith.divf %40, %43 : vector<9x9xf32>
    %cst_9 = arith.constant dense<0.000000e+00> : vector<9x128xf32>
    %45 = tpu.matmul %44, %4, %cst_9 {dimension_numbers = #tpu.dot_dimension_numbers<[1], [0], [0], [1], [0, 0, 1, 1], [], []>} : vector<9x9xf32>, vector<9x128xf32>, vector<9x128xf32> -> vector<9x128xf32>
    %cst_10 = arith.constant dense<0.000000e+00> : vector<9x128xf32>
    %46 = tpu.matmul %44, %8, %cst_10 {dimension_numbers = #tpu.dot_dimension_numbers<[1], [0], [0], [1], [0, 0, 1, 1], [], []>} : vector<9x9xf32>, vector<9x128xf32>, vector<9x128xf32> -> vector<9x128xf32>
    %47 = arith.subf %4, %45 : vector<9x128xf32>
    %cst_11 = arith.constant 0.000000e+00 : f32
    %48 = vector.broadcast %cst_11 : f32 to vector<9x128xf32>
    %49 = arith.maximumf %47, %48 : vector<9x128xf32>
    %50 = arith.subf %45, %4 : vector<9x128xf32>
    %cst_12 = arith.constant 0.000000e+00 : f32
    %51 = vector.broadcast %cst_12 : f32 to vector<9x128xf32>
    %52 = arith.maximumf %50, %51 : vector<9x128xf32>
    %53 = arith.addf %49, %52 : vector<9x128xf32>
    %54 = arith.subf %8, %46 : vector<9x128xf32>
    %cst_13 = arith.constant 0.000000e+00 : f32
    %55 = vector.broadcast %cst_13 : f32 to vector<9x128xf32>
    %56 = arith.maximumf %54, %55 : vector<9x128xf32>
    %57 = arith.addf %53, %56 : vector<9x128xf32>
    %58 = arith.subf %46, %8 : vector<9x128xf32>
    %cst_14 = arith.constant 0.000000e+00 : f32
    %59 = vector.broadcast %cst_14 : f32 to vector<9x128xf32>
    %60 = arith.maximumf %58, %59 : vector<9x128xf32>
    %61 = arith.addf %57, %60 : vector<9x128xf32>
    %cst_15 = arith.constant dense<0.000000e+00> : vector<128xf32>
    %62 = vector.multi_reduction <add>, %61, %cst_15 [0] : vector<9x128xf32> to vector<128xf32>
    %63 = vector.shape_cast %62 : vector<128xf32> to vector<1x128xf32>
    %cst_16 = arith.constant 0.111111112 : f32
    %64 = vector.broadcast %cst_16 : f32 to vector<1x128xf32>
    %65 = arith.mulf %63, %64 : vector<1x128xf32>
    %c0_17 = arith.constant 0 : index
    %c0_18 = arith.constant 0 : index
    %66 = vector.load %arg2[%c0_17, %c0_18] : memref<1x128xf32, #tpu.memory_space<vmem>>, vector<1x128xf32>
    tpu.vector_store %arg2[%c0_17, %c0_18], %65 {strides = array<i32>} : memref<1x128xf32, #tpu.memory_space<vmem>>, vector<1x128xf32>,
    return
  }
  func.func @transform_0(%arg0: i32) -> (i32, i32) {
    %c0_i32 = arith.constant 0 : i32
    %c0_i32_0 = arith.constant 0 : i32
    return %c0_i32, %arg0 : i32, i32
  }
  func.func @transform_1(%arg0: i32) -> (i32, i32) {
    %c0_i32 = arith.constant 0 : i32
    %c0_i32_0 = arith.constant 0 : i32
    return %c0_i32, %arg0 : i32, i32
  }
}

</mosaic_0001>

<llo_original>
// kernel: palindrome_forward.1
$region0: #{palindrome_forward.1}
  #allocation0 [shape = 'u32[]', space=smem, size = 0x4, offset = 0x4, fixed_abs, tag = 'smem constant byte address 0x4 - core index']
  #allocation1 [shape = 'u32[144,128]{1,0:T(1,128)}', space=vmem, size = 0x12000, scoped, tag = 'internal scratch']
  %s0 = inlined_call_operand.hbm [shape: s32[9,256], index: 0, kind: input, shape index: {}]
  %s1 = inlined_call_operand.vmem [shape: f32[1,256], index: 1, kind: output, shape index: {}]
  %s2 = sld [smem:[#allocation0]]
  $region41: #{palindrome_forward.1} parent=0
    _
  %s4 = ssub.s32 1, %s2
  %s5 = scalar_select 0, %s4, %s2
  $region1: #{palindrome_forward.1} parent=0
    #allocation2 [shape = 'u8[16384]{0}', space=vmem, size = 0x4000, scoped, tag = 'input window, operand 0']
    #allocation3 [shape = 's32[2]{0}', space=sflag, size = 0x8, scoped, tag = 'scoped memory for palindrome_forward.1']
    %6 = vsyncpa [#allocation3], 0
    %s7 = scalar_lea.sflag [#allocation3], 1
    %8 = vsyncpa %s7, 0
    loop: start=0, step=1, limit=4
    $region2: #{palindrome_forward.1} parent=1 // loop_pre_header
      _
    $region3: #{palindrome_forward.1} parent=1 // loop_header
      %s10 = sphi 0, %s14
      %p11 = scmp.ge.s32.totalorder %s10, 4
      %s20 = sphi 0, %s22
      %s23 = sphi 0, %s20
      %s24 = sphi 0, %s23
      %s40 = sphi 0, %s24
      %s46 = sphi 0, %s48
      %s49 = sphi 0, %s46
      %s50 = sphi 0, %s49
      %s66 = sphi 0, %s50
    $region4: #{palindrome_forward.1} parent=1 // loop_header_branch
      %13 = sbr.rel (%p11) target = $region8
    $region5: #{palindrome_forward.1} parent=1 // loop_body
      %s15 = ssub.s32 %s10, 1
      %s16 = ssub.s32 %s10, 2
      %s17 = sadd.s32 %s10, 1
      %s18 = ssub.s32 %s10, %s17
      %p19 = scmp.eq.s32.totalorder %s18, 0
      %s21 = sadd.s32 %s20, 1
      %s22 = scalar_select %p19, %s20, %s21
      %p25 = pneg %p19
      %p26 = scmp.eq.s32.totalorder %s10, 1
      %p27 = por %p25, %p26
      %p28 = scmp.ne.s32.totalorder %s20, %s23
      %p29 = scmp.eq.s32.totalorder %s10, 0
      %p30 = por %p28, %p29
      %p31 = scmp.ne.s32.totalorder %s20, %s23
      %p32 = scmp.eq.s32.totalorder %s15, 1
      %p33 = por %p31, %p32
      %p34 = scmp.ne.s32.totalorder %s23, %s24
      %p35 = scmp.eq.s32.totalorder %s15, 0
      %p36 = por %p34, %p35
      %p37 = scmp.ne.s32.totalorder %s23, %s24
      %p38 = scmp.eq.s32.totalorder %s16, 1
      %p39 = por %p37, %p38
      %p41 = scmp.ne.s32.totalorder %s24, %s40
      %p42 = scmp.eq.s32.totalorder %s16, 0
      %p43 = por %p41, %p42
      %s44 = ssub.s32 %s10, %s17
      %p45 = scmp.eq.s32.totalorder %s44, 0
      %s47 = sadd.s32 %s46, 1
      %s48 = scalar_select %p45, %s46, %s47
      %p51 = pneg %p45
      %p52 = scmp.eq.s32.totalorder %s10, 1
      %p53 = por %p51, %p52
      %p54 = scmp.ne.s32.totalorder %s46, %s49
      %p55 = scmp.eq.s32.totalorder %s10, 0
      %p56 = por %p54, %p55
      %p57 = scmp.ne.s32.totalorder %s46, %s49
      %p58 = scmp.eq.s32.totalorder %s15, 1
      %p59 = por %p57, %p58
      %p60 = scmp.ne.s32.totalorder %s49, %s50
      %p61 = scmp.eq.s32.totalorder %s15, 0
      %p62 = por %p60, %p61
      %p63 = scmp.ne.s32.totalorder %s49, %s50
      %p64 = scmp.eq.s32.totalorder %s16, 1
      %p65 = por %p63, %p64
      %p67 = scmp.ne.s32.totalorder %s50, %s66
      %p68 = scmp.eq.s32.totalorder %s16, 0
      %p69 = por %p67, %p68
      %p70 = scmp.le.s32.totalorder 1, %s10
      %p71 = scmp.lt.s32.totalorder %s10, 3
      %p72 = pnand %p70, %p71
      %p73 = pneg %p72
      // Predicated region
      $region9: #{palindrome_forward.1} parent=5 // pred_check
        _
      $region10: #{palindrome_forward.1} parent=5 // pred_check_branch
        %75 = sbr.rel (%p72) target = $region12
      $region11: #{palindrome_forward.1} parent=5 // pred_region
        %s76 = ssub.s32 %s10, 1
      $region12: #{palindrome_forward.1} parent=5 // pred_fallthru
        _
      %p77 = scmp.lt.s32.totalorder %s10, 2
      // Predicated region
      $region13: #{palindrome_forward.1} parent=5 // pred_check
        %p78 = pneg %p77
      $region14: #{palindrome_forward.1} parent=5 // pred_check_branch
        %80 = sbr.rel (%p78) target = $region16
      $region15: #{palindrome_forward.1} parent=5 // pred_region
        // Predicated region
        $region17: #{palindrome_forward.1} parent=15 // pred_check
          %p81 = pneg %p30
        $region18: #{palindrome_forward.1} parent=15 // pred_check_branch
          %83 = sbr.rel (%p81) target = $region20
        $region19: #{palindrome_forward.1} parent=15 // pred_region
          %s84 = sand.u32 %s20, 1
          %s85 = scalar_lea.sflag [#allocation3], %s84
          %s86 = sand.u32 %s20, 1
          %s87 = smul.addr %s86, 16
          %s88 = scalar_lea.vmem [#allocation2], %s87
          %s90 = ssub.s32 256, 256
          %91 = vsyncadd %s85, %s90
          %s92 = smul.addr %s10, 128
          %s93 = scalar_lea.hbm %s0, %s92
          %s94 = sshll.u32 %s88, 4
          %s95 = int_to_ptr.vmem [resolvable:$true] %s94
          %100 = dma.hbm_to_vmem [thread:$0]  %s93, 256, %s95, %s85, 256, 128, 8
        $region20: #{palindrome_forward.1} parent=15 // pred_fallthru
          _
      $region16: #{palindrome_forward.1} parent=5 // pred_fallthru
        _
      %p101 = scmp.le.s32.totalorder 1, %s10
      %p102 = scmp.lt.s32.totalorder %s10, 3
      %p103 = pnand %p101, %p102
      %p104 = pneg %p103
      // Predicated region
      $region21: #{palindrome_forward.1} parent=5 // pred_check
        _
      $region22: #{palindrome_forward.1} parent=5 // pred_check_branch
        %106 = sbr.rel (%p103) target = $region24
      $region23: #{palindrome_forward.1} parent=5 // pred_region
        %s107 = ssub.s32 %s10, 1
        %s108 = sand.u32 %s23, 1
        %s109 = scalar_lea.sflag [#allocation3], %s108
        %s110 = sand.u32 %s23, 1
        %s111 = smul.addr %s110, 16
        %s112 = scalar_lea.vmem [#allocation2], %s111
        // Predicated region
        $region25: #{palindrome_forward.1} parent=23 // pred_check
          %p113 = pneg %p36
        $region26: #{palindrome_forward.1} parent=23 // pred_check_branch
          %115 = sbr.rel (%p113) target = $region28
        $region27: #{palindrome_forward.1} parent=23 // pred_region
          %116 = dma.done %s109, 256
        $region28: #{palindrome_forward.1} parent=23 // pred_fallthru
          _
        %s117 = sand.u32 %s23, 1
        %s118 = scalar_lea.sflag [#allocation3], %s117
        %s119 = sand.u32 %s23, 1
        %s120 = smul.addr %s119, 16
        %s121 = scalar_lea.vmem [#allocation2], %s120
        %p122 = pneg %p36
        %p123 = pneg %p33
        %p124 = pneg %p62
        %p125 = pneg %p59
        %p126 = scmp.lt.s32.totalorder %s15, 1
        %s127 = scalar_select %p126, %s15, 1
        %s128 = scalar_lea.vmem %s1, %s127
        %p129 = scmp.lt.s32.totalorder %s15, 1
        %s130 = scalar_select %p129, %s15, 1
        %s131 = scalar_lea.vmem %s1, %s130
        %v132 = vld [vmem:[%s112] sm:$0xff]
        %v133 = vld [vmem:[%s112 + $0x8] sm:$0x1]
        %vm134 = vcmp.eq.s32.totalorder %v132, 0
        %vm135 = vcmp.eq.s32.totalorder %v133, 0
        %v136 = vsel %vm134, 1, 0
        %v137 = vsel %vm135, 1, 0
        %v138 = vcvt.s32.f32 %v136
        %v139 = vcvt.s32.f32 %v137
        %vm140 = vcmp.eq.s32.totalorder %v132, 1
        %vm141 = vcmp.eq.s32.totalorder %v133, 1
        %v142 = vsel %vm140, 1, 0
        %v143 = vsel %vm141, 1, 0
        %v144 = vcvt.s32.f32 %v142
        %v145 = vcvt.s32.f32 %v143
        %v146 = vlaneseq
        %v147 = vshrl.u32 %v146, 7
        %v148 = vadd.s32 %v147, 8
        %v149 = vlaneseq
        %v150 = vand.u32 %v149, 127
        %v151 = vcvt.s32.f32 %v150
        %v152 = vmul.f32 %v151, 0.11111111
        %v153 = vsub.s32 9, %v147
        %v154 = vsub.s32 9, %v148
        %v155 = vcvt.s32.f32 %v153
        %v156 = vcvt.s32.f32 %v154
        %v157 = vmul.f32 %v155, 0.11111111
        %v158 = vmul.f32 %v156, 0.11111111
        %vm159 = vcmp.eq.s32.totalorder %v147, 0
        %vm160 = vcmp.eq.s32.totalorder %v148, 0
        %vm161 = vcmp.eq.s32.totalorder %v150, 0
        %vm162 = vmand %vm159, %vm161
        %vm163 = vmand %vm160, %vm161
        %v164 = vsel %vm162, 1, 0
        %v165 = vsel %vm163, 1, 0
        %v166 = vcvt.s32.f32 %v164
        %v167 = vcvt.s32.f32 %v165
        %v168 = vmul.f32 %v157, 20000.0
        %v169 = vmul.f32 %v158, 20000.0
        %v170 = vmul.f32 %v168, %v152
        %v171 = vmul.f32 %v169, %v152
        %v172 = vmul.f32 %v152, %v152
        %v173 = vmul.f32 %v172, 10000.0
        %v174 = vsub.f32 %v170, %v173
        %v175 = vsub.f32 %v171, %v173
        %v176 = vmul.f32 %v166, 10000.0
        %v177 = vmul.f32 %v167, 10000.0
        %v178 = vadd.f32 %v174, %v176
        %v179 = vadd.f32 %v175, %v177
        %vm180 = vcmask 72704
        %v181 = vsel %vm180, %v178, -inf
        %182 = vmax.xlane.f32.xlu0 %v181
        %v183 = vpop.xlane.xlu0 %182
        %vm184 = vcmask 65536
        %v185 = vsel %vm184, %v179, -inf
        %186 = vmax.xlane.f32.xlu0 %v185
        %v187 = vpop.xlane.xlu0 %186
        %v188 = vsub.f32 %v178, %v183
        %v189 = vsub.f32 %v179, %v187
        %v190 = vmul.f32 %v188, 1.442695
        %v191 = vpow.pop %v190
        %v192 = vmul.f32 %v189, 1.442695
        %v193 = vpow.pop %v192
        %v194 = vsel %vm180, %v191, 0.0
        %195 = vadd.xlane.f32.xlu0 %v194
        %v196 = vpop.xlane.xlu0 %195
        %v197 = vsel %vm184, %v193, 0.0
        %198 = vadd.xlane.f32.xlu0 %v197
        %v199 = vpop.xlane.xlu0 %198
        %v200 = vrcp.pop %v196
        %v201 = vmul.f32 %v191, %v200
        %v202 = vrcp.pop %v199
        %v203 = vmul.f32 %v193, %v202
        %v205 = vsel %vm180, %v201, 0
        %v208 = vsel %vm180, %v203, 0
        %vm210 = vcmask 1040384
        %v212 = vsel %vm210, %v139, 0
        %214 = vmatprep.subr.mxu0 0.0
        %215 = vmatpush1.msra.mxu0 %v138
        %216 = vmatprep.subr.mxu0 0.0
        %217 = vmatpush1.msra.mxu0 %v212
        %218 = vmatprep.subr.mxu0 0.0
        %219 = vmatpush1.msra.mxu0 0.0
        %220 = vmatprep.subr.mxu0 0.0
        %221 = vmatpush1.msra.mxu0 0.0
        %222 = vmatprep.subr.mxu0 0.0
        %223 = vmatpush1.msra.mxu0 0.0
        %224 = vmatprep.subr.mxu0 0.0
        %225 = vmatpush1.msra.mxu0 0.0
        %226 = vmatprep.subr.mxu0 0.0
        %227 = vmatpush1.msra.mxu0 0.0
        %228 = vmatprep.subr.mxu0 0.0
        %229 = vmatpush1.msra.mxu0 0.0
        %230 = vmatprep.subr.mxu0 0.0
        %231 = vmatpush1.msra.mxu0 0.0
        %232 = vmatprep.subr.mxu0 0.0
        %233 = vmatpush1.msra.mxu0 0.0
        %234 = vmatprep.subr.mxu0 0.0
        %235 = vmatpush1.msra.mxu0 0.0
        %236 = vmatprep.subr.mxu0 0.0
        %237 = vmatpush1.msra.mxu0 0.0
        %238 = vmatprep.subr.mxu0 0.0
        %239 = vmatpush1.msra.mxu0 0.0
        %240 = vmatprep.subr.mxu0 0.0
        %241 = vmatpush1.msra.mxu0 0.0
        %242 = vmatprep.subr.mxu0 0.0
        %243 = vmatpush1.msra.mxu0 0.0
        %244 = vmatprep.subr.mxu0 0.0
        %245 = vmatpush1.msra.mxu0 0.0
        %246 = vmatprep.subr.mxu0 0.0
        %247 = vmatpush1.msra.mxu0 0.0
        %248 = vmatprep.subr.mxu0 0.0
        %249 = vmatpush1.msra.mxu0 0.0
        %250 = vmatprep.subr.mxu0 0.0
        %251 = vmatpush1.msra.mxu0 0.0
        %252 = vmatprep.subr.mxu0 0.0
        %253 = vmatpush1.msra.mxu0 0.0
        %254 = vmatprep.subr.mxu0 0.0
        %255 = vmatpush1.msra.mxu0 0.0
        %256 = vmatprep.subr.mxu0 0.0
        %257 = vmatpush1.msra.mxu0 0.0
        %258 = vmatprep.subr.mxu0 0.0
        %259 = vmatpush1.msra.mxu0 0.0
        %260 = vmatprep.subr.mxu0 0.0
        %261 = vmatpush1.msra.mxu0 0.0
        %262 = vmatprep.subr.mxu0 0.0
        %263 = vmatpush1.msra.mxu0 0.0
        %264 = vmatprep.subr.mxu0 0.0
        %265 = vmatpush1.msra.mxu0 0.0
        %266 = vmatprep.subr.mxu0 0.0
        %267 = vmatpush1.msra.mxu0 0.0
        %268 = vmatprep.subr.mxu0 0.0
        %269 = vmatpush1.msra.mxu0 0.0
        %270 = vmatprep.subr.mxu0 0.0
        %271 = vmatpush1.msra.mxu0 0.0
        %272 = vmatprep.subr.mxu0 0.0
        %273 = vmatpush1.msra.mxu0 0.0
        %274 = vmatprep.subr.mxu0 0.0
        %275 = vmatpush1.msra.mxu0 0.0
        %276 = vmatprep.subr.mxu0 0.0
        %277 = vmatpush1.msra.mxu0 0.0
        %278 = vmatprep.mubr.f32.mxu0 0.0
        %279 = vmatmul.mubr.f32.gmra.mrb[0].mxu0 %v205
        %v280 = vpop.f32.mrb[0].mxu0
        %v281 = vadd.f32 0.0, %v280
        %v282 = vpop.f32.mrb[0].mxu0
        %283 = vmatprep.mubr.f32.mxu0 0.0
        %284 = vmatmul.mubr.f32.gmra.mrb[0].mxu0 %v208
        %v285 = vpop.f32.mrb[0].mxu0
        %v286 = vadd.f32 0.0, %v285
        %v287 = vpop.f32.mrb[0].mxu0
        %288 = vdwg.mxu0
        %v290 = vsel %vm210, %v145, 0
        %292 = vmatprep.subr.mxu0 0.0
        %293 = vmatpush1.msra.mxu0 %v144
        %294 = vmatprep.subr.mxu0 0.0
        %295 = vmatpush1.msra.mxu0 %v290
        %296 = vmatprep.subr.mxu0 0.0
        %297 = vmatpush1.msra.mxu0 0.0
        %298 = vmatprep.subr.mxu0 0.0
        %299 = vmatpush1.msra.mxu0 0.0
        %300 = vmatprep.subr.mxu0 0.0
        %301 = vmatpush1.msra.mxu0 0.0
        %302 = vmatprep.subr.mxu0 0.0
        %303 = vmatpush1.msra.mxu0 0.0
        %304 = vmatprep.subr.mxu0 0.0
        %305 = vmatpush1.msra.mxu0 0.0
        %306 = vmatprep.subr.mxu0 0.0
        %307 = vmatpush1.msra.mxu0 0.0
        %308 = vmatprep.subr.mxu0 0.0
        %309 = vmatpush1.msra.mxu0 0.0
        %310 = vmatprep.subr.mxu0 0.0
        %311 = vmatpush1.msra.mxu0 0.0
        %312 = vmatprep.subr.mxu0 0.0
        %313 = vmatpush1.msra.mxu0 0.0
        %314 = vmatprep.subr.mxu0 0.0
        %315 = vmatpush1.msra.mxu0 0.0
        %316 = vmatprep.subr.mxu0 0.0
        %317 = vmatpush1.msra.mxu0 0.0
        %318 = vmatprep.subr.mxu0 0.0
        %319 = vmatpush1.msra.mxu0 0.0
        %320 = vmatprep.subr.mxu0 0.0
        %321 = vmatpush1.msra.mxu0 0.0
        %322 = vmatprep.subr.mxu0 0.0
        %323 = vmatpush1.msra.mxu0 0.0
        %324 = vmatprep.subr.mxu0 0.0
        %325 = vmatpush1.msra.mxu0 0.0
        %326 = vmatprep.subr.mxu0 0.0
        %327 = vmatpush1.msra.mxu0 0.0
        %328 = vmatprep.subr.mxu0 0.0
        %329 = vmatpush1.msra.mxu0 0.0
        %330 = vmatprep.subr.mxu0 0.0
        %331 = vmatpush1.msra.mxu0 0.0
        %332 = vmatprep.subr.mxu0 0.0
        %333 = vmatpush1.msra.mxu0 0.0
        %334 = vmatprep.subr.mxu0 0.0
        %335 = vmatpush1.msra.mxu0 0.0
        %336 = vmatprep.subr.mxu0 0.0
        %337 = vmatpush1.msra.mxu0 0.0
        %338 = vmatprep.subr.mxu0 0.0
        %339 = vmatpush1.msra.mxu0 0.0
        %340 = vmatprep.subr.mxu0 0.0
        %341 = vmatpush1.msra.mxu0 0.0
        %342 = vmatprep.subr.mxu0 0.0
        %343 = vmatpush1.msra.mxu0 0.0
        %344 = vmatprep.subr.mxu0 0.0
        %345 = vmatpush1.msra.mxu0 0.0
        %346 = vmatprep.subr.mxu0 0.0
        %347 = vmatpush1.msra.mxu0 0.0
        %348 = vmatprep.subr.mxu0 0.0
        %349 = vmatpush1.msra.mxu0 0.0
        %350 = vmatprep.subr.mxu0 0.0
        %351 = vmatpush1.msra.mxu0 0.0
        %352 = vmatprep.subr.mxu0 0.0
        %353 = vmatpush1.msra.mxu0 0.0
        %354 = vmatprep.subr.mxu0 0.0
        %355 = vmatpush1.msra.mxu0 0.0
        %356 = vmatprep.mubr.f32.mxu0 0.0
        %357 = vmatmul.mubr.f32.gmra.mrb[0].mxu0 %v205
        %v358 = vpop.f32.mrb[0].mxu0
        %v359 = vadd.f32 0.0, %v358
        %v360 = vpop.f32.mrb[0].mxu0
        %361 = vmatprep.mubr.f32.mxu0 0.0
        %362 = vmatmul.mubr.f32.gmra.mrb[0].mxu0 %v208
        %v363 = vpop.f32.mrb[0].mxu0
        %v364 = vadd.f32 0.0, %v363
        %v365 = vpop.f32.mrb[0].mxu0
        %366 = vdwg.mxu0
        %v367 = vsub.f32 %v138, %v281
        %v368 = vsub.f32 %v139, %v286
        %v369 = vmax.f32 %v367, 0.0
        %v370 = vmax.f32 %v368, 0.0
        %v371 = vsub.f32 %v281, %v138
        %v372 = vsub.f32 %v286, %v139
        %v373 = vmax.f32 %v371, 0.0
        %v374 = vmax.f32 %v372, 0.0
        %v375 = vadd.f32 %v369, %v373
        %v376 = vadd.f32 %v370, %v374
        %v377 = vsub.f32 %v144, %v359
        %v378 = vsub.f32 %v145, %v364
        %v379 = vmax.f32 %v377, 0.0
        %v380 = vmax.f32 %v378, 0.0
        %v381 = vadd.f32 %v375, %v379
        %v382 = vadd.f32 %v376, %v380
        %v383 = vsub.f32 %v359, %v144
        %v384 = vsub.f32 %v364, %v145
        %v385 = vmax.f32 %v383, 0.0
        %v386 = vmax.f32 %v384, 0.0
        %v387 = vadd.f32 %v381, %v385
        %v388 = vadd.f32 %v382, %v386
        %v389 = vsel %vm210, %v388, 0.0
        %v390 = vadd.f32 %v387, %v389
        %v391 = vrot.slane %v390, 4
        %v392 = vadd.f32 %v390, %v391
        %v393 = vrot.slane %v392, 2
        %v394 = vadd.f32 %v392, %v393
        %v395 = vrot.slane %v394, 1
        %v396 = vadd.f32 %v394, %v395
        %v397 = vmul.f32 %v396, 0.11111111
        %398 = vst [vmem:[%s131] sm:$0x1] %v397
        %p399 = scmp.lt.s32.totalorder %s15, 1
        %s400 = scalar_select %p399, %s15, 1
        %s401 = scalar_lea.vmem %s1, %s400
        // Predicated region
        $region29: #{palindrome_forward.1} parent=23 // pred_check
          %p402 = pneg %p59
        $region30: #{palindrome_forward.1} parent=23 // pred_check_branch
          %404 = sbr.rel (%p402) target = $region32
        $region31: #{palindrome_forward.1} parent=23 // pred_region
          _
        $region32: #{palindrome_forward.1} parent=23 // pred_fallthru
          _
      $region24: #{palindrome_forward.1} parent=5 // pred_fallthru
        _
      %p405 = scmp.le.s32.totalorder 2, %s10
      // Predicated region
      $region33: #{palindrome_forward.1} parent=5 // pred_check
        %p406 = pneg %p405
      $region34: #{palindrome_forward.1} parent=5 // pred_check_branch
        %408 = sbr.rel (%p406) target = $region36
      $region35: #{palindrome_forward.1} parent=5 // pred_region
        %s409 = ssub.s32 %s10, 2
        // Predicated region
        $region37: #{palindrome_forward.1} parent=35 // pred_check
          %p410 = pneg %p65
        $region38: #{palindrome_forward.1} parent=35 // pred_check_branch
          %412 = sbr.rel (%p410) target = $region40
        $region39: #{palindrome_forward.1} parent=35 // pred_region
          %p413 = scmp.lt.s32.totalorder %s16, 1
          %s414 = scalar_select %p413, %s16, 1
          %s415 = scalar_lea.vmem %s1, %s414
        $region40: #{palindrome_forward.1} parent=35 // pred_fallthru
          _
      $region36: #{palindrome_forward.1} parent=5 // pred_fallthru
        _
    $region6: #{palindrome_forward.1} parent=1 // loop_footer
      %s14 = sadd.s32 1, %s10
    $region7: #{palindrome_forward.1} parent=1 // loop_footer_branch
      %9 = sbr.rel target = $region3
    $region8: #{palindrome_forward.1} parent=1 // loop_exit
      _
    %416 = vsyncpa [#allocation3], 1
    %s417 = scalar_lea.sflag [#allocation3], 1
    %418 = vsyncpa %s417, 1

</llo_original>
